<compile_context>
chip_gen: v5e
topology: v5e:2x2
jax: 0.10.0
libtpu: 0.0.40
codegen_flags: <defaults>
</compile_context>

<pallas_src>
import functools

import jax
import jax.numpy as jnp
from jax.experimental import pallas as pl
from jax.experimental.pallas import tpu as pltpu

LANE = 128


# ----------------------------------------------------------------------------
# Pallas kernel
# ----------------------------------------------------------------------------
def chomp1d_kernel(x_ref, o_ref):
    """Full-tile copy.  The BlockSpecs window out the chomped tail, so the
    body is a plain vld/vst pair — no slicing, no arithmetic."""
    o_ref[...] = x_ref[...]


def _round_down(v, m):
    return (v // m) * m


# ----------------------------------------------------------------------------
# Wrapper
# ----------------------------------------------------------------------------
@functools.partial(jax.jit, static_argnames=("chomp_size",))
def chomp1d(x, chomp_size):
    """Pallas equivalent of PyTorch Chomp1d: x[:, :, :-chomp_size].contiguous().

    x : (B, C, L) array.  Returns (B, C, L - chomp_size).
    """
    B, C, L = x.shape
    # TODO(synk): PyTorch's x[:, :, :-0] (chomp_size == 0) returns an empty
    # tensor; that degenerate case is not supported here (TCN uses chomp > 0).
    assert 0 < chomp_size < L, "chomp_size must be in (0, L)"
    L_out = L - chomp_size

    rows = B * C
    x2 = x.reshape(rows, L)  # contiguous view: temporal axis on the lane dim

    itemsize = x.dtype.itemsize
    sublane = max(8, 32 // max(itemsize, 1))  # 8 f32, 16 bf16, 32 int8/fp8

    # ---- column tiling: never DMA the chomped tail ---------------------------
    l_pad = pl.cdiv(L_out, LANE) * LANE       # lane-rounded output width
    tile_c = l_pad if l_pad <= 1024 else 512  # single block if cheap, else stream

    # ---- row tiling: VMEM-budget derived, pipeline-friendly ------------------
    # Per-step footprint ~= 2 (double buffer) * (input + output) blocks.
    vmem_budget = 8 * 1024 * 1024
    tile_r = max(sublane,
                 _round_down(vmem_budget // (4 * tile_c * itemsize), sublane))
    if rows >= 4 * sublane:
        # Guarantee >= ~4 row blocks so block i+1's read overlaps block i's
        # writeback and v7x's two TensorCores both get work.
        tile_r = min(tile_r, max(sublane, _round_down(rows // 4, sublane)))
    else:
        tile_r = min(tile_r, rows)  # block == full row extent (always legal)

    grid = (pl.cdiv(rows, tile_r), pl.cdiv(L_out, tile_c))

    out2 = pl.pallas_call(
        chomp1d_kernel,
        out_shape=jax.ShapeDtypeStruct((rows, L_out), x.dtype),
        grid=grid,
        in_specs=[pl.BlockSpec((tile_r, tile_c), lambda i, j: (i, j))],
        out_specs=pl.BlockSpec((tile_r, tile_c), lambda i, j: (i, j)),
        compiler_params=pltpu.CompilerParams(
            dimension_semantics=("parallel", "parallel"),
            vmem_limit_bytes=32 * 1024 * 1024,
        ),
    )(x2)

    return out2.reshape(B, C, L_out)


# ----------------------------------------------------------------------------
# Main
# ----------------------------------------------------------------------------
if __name__ == "__main__":
    key = jax.random.PRNGKey(0)
    k1, k2, k3 = jax.random.split(key, 3)

    # Small shape matching the PyTorch module's (batch, channels, length) input.
    B, C, L = 2, 4, 16
    chomp = 2
    x = jax.random.normal(k1, (B, C, L), jnp.float32)
    out = jax.block_until_ready(chomp1d(x, chomp))
    assert out.shape == (B, C, L - chomp), out.shape
    assert bool(jnp.array_equal(out, x[:, :, :-chomp]))

    # Multi-row-block path (grid_r > 1), L_out an exact multiple of 128.
    B2, C2, L2, chomp2 = 8, 128, 384, 128
    x2 = jax.random.normal(k2, (B2, C2, L2), jnp.float32)
    out2 = jax.block_until_ready(chomp1d(x2, chomp2))
    assert out2.shape == (B2, C2, L2 - chomp2), out2.shape
    assert bool(jnp.array_equal(out2, x2[:, :, :-chomp2]))

    # Column-tiled path: long sequence, L_out not a multiple of the column tile
    # (exercises the masked final column block and grid_c > 1).
    B3, C3, L3, chomp3 = 4, 64, 1500, 50
    x3 = jax.random.normal(k3, (B3, C3, L3), jnp.float32)
    out3 = jax.block_until_ready(chomp1d(x3, chomp3))
    assert out3.shape == (B3, C3, L3 - chomp3), out3.shape
    assert bool(jnp.array_equal(out3, x3[:, :, :-chomp3]))

    print("KERNEL_OK")
</pallas_src>

<mosaic_0001>
module attributes {stable_mosaic.version = 11 : i64} {
  func.func @chomp1d_kernel(%arg0: i32, %arg1: i32, %arg2: memref<8x128xf32, #tpu.memory_space<vmem>>, %arg3: memref<8x128xf32, #tpu.memory_space<vmem>>) attributes {dimension_semantics = [#tpu.dimension_semantics<parallel>, #tpu.dimension_semantics<parallel>], iteration_bounds = array<i64: 1, 1>, scalar_prefetch = 0 : i64, scratch_operands = 0 : i64, tpu.core_type = #tpu.core_type<tc>, window_params = [{transform_indices = @transform_0, window_bounds = array<i64: 8, 128>}, {transform_indices = @transform_1, window_bounds = array<i64: 8, 128>}]} {
    %c0 = arith.constant 0 : index
    %c0_0 = arith.constant 0 : index
    %0 = vector.load %arg2[%c0, %c0_0] : memref<8x128xf32, #tpu.memory_space<vmem>>, vector<8x128xf32>
    %c0_1 = arith.constant 0 : index
    %c0_2 = arith.constant 0 : index
    %1 = vector.load %arg3[%c0_1, %c0_2] : memref<8x128xf32, #tpu.memory_space<vmem>>, vector<8x128xf32>
    tpu.vector_store %arg3[%c0_1, %c0_2], %0 {strides = array<i32>} : memref<8x128xf32, #tpu.memory_space<vmem>>, vector<8x128xf32>,
    return
  }
  func.func @transform_0(%arg0: i32, %arg1: i32) -> (i32, i32) {
    %c0_i32 = arith.constant 0 : i32
    return %arg0, %arg1 : i32, i32
  }
  func.func @transform_1(%arg0: i32, %arg1: i32) -> (i32, i32) {
    %c0_i32 = arith.constant 0 : i32
    return %arg0, %arg1 : i32, i32
  }
}

</mosaic_0001>

<llo_original>
// kernel: chomp1d.1
$region0: #{chomp1d.1}
  #allocation0 [shape = 'u32[]', space=smem, size = 0x4, offset = 0x4, fixed_abs, tag = 'smem constant byte address 0x4 - core index']
  #allocation1 [shape = 'u32[72,128]{1,0:T(1,128)}', space=vmem, size = 0x9000, scoped, tag = 'internal scratch']
  %s0 = inlined_call_operand.hbm [shape: f32[8,16], index: 0, kind: input, shape index: {}]
  %s1 = inlined_call_operand.hbm [shape: f32[8,14], index: 1, kind: output, shape index: {}]
  %s2 = sld [smem:[#allocation0]]
  $region18: #{chomp1d.1} parent=0
    _
  %s4 = ssub.s32 1, %s2
  %s5 = scalar_select 0, %s4, %s2
  $region1: #{chomp1d.1} parent=0
    #allocation2 [shape = 'u8[4096]{0}', space=vmem, size = 0x1000, scoped, tag = 'input window, operand 0, single buffered']
    #allocation3 [shape = 's32[1]{0}', space=sflag, size = 0x4, scoped, tag = 'scoped memory for chomp1d.1']
    #allocation4 [shape = 's32[1]{0}', space=sflag, size = 0x4, scoped, tag = 'scoped memory for chomp1d.1']
    #allocation5 [shape = 'u8[4096]{0}', space=vmem, size = 0x1000, scoped, tag = 'output window, operand 0, single buffered']
    %6 = vsyncpa [#allocation3], 0
    %7 = vsyncpa [#allocation4], 0
    // Predicated region
    $region2: #{chomp1d.1} parent=1 // pred_check
      _
    $region3: #{chomp1d.1} parent=1 // pred_check_branch
      %9 = sbr.rel (0) target = $region5
    $region4: #{chomp1d.1} parent=1 // pred_region
      %11 = vsyncadd [#allocation3], 0
      %s13 = sshll.u32 %s0, 4
      %s14 = int_to_ptr.hbm [resolvable:$true] %s13
      %s15 = sshll.u32 [#allocation2], 4
      %s16 = int_to_ptr.vmem [resolvable:$true] %s15
      %18 = dma.hbm_to_vmem [thread:$0]  %s14, 128, %s16, [#allocation3]
    $region5: #{chomp1d.1} parent=1 // pred_fallthru
      _
    // Predicated region
    $region6: #{chomp1d.1} parent=1 // pred_check
      _
    $region7: #{chomp1d.1} parent=1 // pred_check_branch
      %20 = sbr.rel (0) target = $region9
    $region8: #{chomp1d.1} parent=1 // pred_region
      %22 = dma.done [#allocation3], 128
    $region9: #{chomp1d.1} parent=1 // pred_fallthru
      _
    %v23 = vld [vmem:[#allocation2] sm:$0xff]
    %24 = vst [vmem:[#allocation5] sm:$0xff] %v23
    // Predicated region
    $region10: #{chomp1d.1} parent=1 // pred_check
      _
    $region11: #{chomp1d.1} parent=1 // pred_check_branch
      %26 = sbr.rel (0) target = $region13
    $region12: #{chomp1d.1} parent=1 // pred_region
      %28 = vsyncadd [#allocation4], 0
      %s30 = sshll.u32 [#allocation5], 4
      %s31 = int_to_ptr.vmem [resolvable:$true] %s30
      %s32 = sshll.u32 %s1, 4
      %s33 = int_to_ptr.hbm [resolvable:$true] %s32
      %35 = dma.vmem_to_hbm [thread:$0]  %s31, 128, %s33, [#allocation4]
    $region13: #{chomp1d.1} parent=1 // pred_fallthru
      _
    // Predicated region
    $region14: #{chomp1d.1} parent=1 // pred_check
      _
    $region15: #{chomp1d.1} parent=1 // pred_check_branch
      %37 = sbr.rel (0) target = $region17
    $region16: #{chomp1d.1} parent=1 // pred_region
      %39 = dma.done [#allocation4], 128
    $region17: #{chomp1d.1} parent=1 // pred_fallthru
      _
    %40 = vsyncpa [#allocation3], 1
    %41 = vsyncpa [#allocation4], 1

</llo_original>
